<compile_context>
chip_gen: v7x
topology: tpu7x:2x2x1
jax: 0.10.0
libtpu: 0.0.40
codegen_flags: <defaults>
</compile_context>

<pallas_src>
import functools

import jax
import jax.numpy as jnp
from jax import lax
from jax.experimental import pallas as pl
from jax.experimental.pallas import tpu as pltpu


def _sentence_embed_kernel(x_ref, len_ref, w_ref, o_ref, *, normalize):
    # x_ref   : (TB, S, Hin) bf16  token-level hidden states (TB batch rows)
    # len_ref : (TB, 1, 1)   int32 valid-token (prefix) lengths per row
    # w_ref   : (Hin, H)     bf16  synthetic linear-encoder projection weight
    # o_ref   : (TB, H)      f32   sentence embeddings (lane-dense store)
    x = x_ref[...].astype(jnp.float32)            # upcast: v5e has no bf16 VALU
    lens = len_ref[...]                           # (TB, 1, 1) int32

    # Synthesize the prefix attention mask in-registers (no mask DMA stream).
    sidx = lax.broadcasted_iota(jnp.int32, (x.shape[0], x.shape[1], 1), 1)
    m = (sidx < lens).astype(jnp.float32)         # (TB, S, 1)

    # Masked sum over the sequence axis BEFORE the projection (exact only for
    # the linear stand-in encoder — see module-level TODO).
    pooled = jnp.sum(x * m, axis=1)               # (TB, Hin) f32

    # Projection on the MXU: bf16 inputs (checkpoint compute dtype), f32 acc.
    emb = jnp.dot(pooled.astype(jnp.bfloat16), w_ref[...],
                  preferred_element_type=jnp.float32)     # (TB, H) f32

    if normalize:
        # The mean-pool divide by clamp(sum(mask), 1e-9) is a positive per-row
        # scalar and cancels under L2 normalization; fold it and use a single
        # rsqrt on the EUP.
        sq = jnp.sum(emb * emb, axis=1, keepdims=True)    # (TB, 1)
        scale = lax.rsqrt(jnp.maximum(sq, 1e-24))         # == 1/max(||emb||,1e-12)
        o_ref[...] = (emb * scale).astype(o_ref.dtype)
    else:
        denom = jnp.maximum(jnp.sum(m, axis=1), 1e-9)     # (TB, 1) == clamp(len)
        o_ref[...] = (emb * pl.reciprocal(denom, approx=True)).astype(o_ref.dtype)


def sentence_embedding(hidden_states, attention_mask, proj_w,
                       *, normalize=True, batch_tile=64):
    """hidden_states: [B, S, Hin] (any float, fed to kernel as bf16);
    attention_mask: [B, S] 0/1 prefix mask; proj_w: [Hin, H]."""
    B, S, Hin = hidden_states.shape
    H = proj_w.shape[1]

    x = hidden_states.astype(jnp.bfloat16)                     # HBM-bound stream
    w_bf16 = proj_w.astype(jnp.bfloat16)                       # compute dtype
    # Prefix lengths from the mask (tiny DMA instead of a padded mask stream).
    lens = jnp.sum(attention_mask.astype(jnp.int32), axis=1).reshape(B, 1, 1)

    # Pad B up to a multiple of 8 so the (TB, H) output block stays
    # (8,128)-aligned (unmasked vst); padded rows have length 0 -> zero output.
    B_pad = -(-B // 8) * 8
    if B_pad != B:
        pad = B_pad - B
        x = jnp.pad(x, ((0, pad), (0, 0), (0, 0)))
        lens = jnp.pad(lens, ((0, pad), (0, 0), (0, 0)))

    # Batch tile: largest power of two (>= 8) that divides B_pad, capped at
    # batch_tile; keep the grid length >= 2 when possible so ("parallel",)
    # can shard across the two TensorCores on v7x.
    TB = max(8, 1 << (max(int(batch_tile), 8).bit_length() - 1))
    while TB > 8 and B_pad % TB != 0:
        TB //= 2
    if B_pad // TB < 2 and TB > 8:
        TB //= 2
    assert B_pad % TB == 0 and TB % 8 == 0

    kernel = functools.partial(_sentence_embed_kernel, normalize=normalize)

    cost = pl.CostEstimate(
        flops=2 * B_pad * S * Hin + 2 * B_pad * Hin * H + 4 * B_pad * H,
        transcendentals=B_pad,
        bytes_accessed=(B_pad * S * Hin * 2) + (B_pad * 4)
                       + (Hin * H * 2) + (B_pad * H * 4),
    )

    out = pl.pallas_call(
        kernel,
        out_shape=jax.ShapeDtypeStruct((B_pad, H), jnp.float32),
        grid_spec=pltpu.PrefetchScalarGridSpec(
            num_scalar_prefetch=0,
            grid=(B_pad // TB,),
            in_specs=[
                pl.BlockSpec((TB, S, Hin), lambda b: (b, 0, 0)),
                pl.BlockSpec((TB, 1, 1), lambda b: (b, 0, 0)),
                pl.BlockSpec((Hin, H), lambda b: (0, 0)),   # resident weight
            ],
            out_specs=pl.BlockSpec((TB, H), lambda b: (b, 0)),
        ),
        compiler_params=pltpu.CompilerParams(
            dimension_semantics=("parallel",),
            vmem_limit_bytes=32 * 1024 * 1024),
        cost_estimate=cost,
    )(x, lens, w_bf16)

    return out[:B] if B_pad != B else out


def _reference(hidden_states, attention_mask, proj_w, normalize=True):
    # Pure-JAX equivalent of the torch module (bf16 checkpoint compute dtype).
    x = hidden_states.astype(jnp.bfloat16).astype(jnp.float32)
    w = proj_w.astype(jnp.bfloat16).astype(jnp.float32)
    tok = jnp.einsum("bsd,dh->bsh", x, w, precision=lax.Precision.HIGHEST)
    m = attention_mask.astype(jnp.float32)[..., None]
    pooled = jnp.sum(tok * m, axis=1) / jnp.clip(jnp.sum(m, axis=1), 1e-9)
    if normalize:
        norm = jnp.linalg.norm(pooled, axis=1, keepdims=True)
        pooled = pooled / jnp.maximum(norm, 1e-12)
    return pooled


if __name__ == "__main__":
    B, S, Hin, H, VOCAB = 12, 8, 128, 128, 64   # B=12 exercises the pad-to-16 path
    key = jax.random.PRNGKey(0)
    k_emb, k_ids, k_w = jax.random.split(key, 3)

    # Deterministic synthetic "model" parameters (embedding table kept in bf16).
    embed_table = (jax.random.normal(k_emb, (VOCAB, Hin), jnp.float32) * 0.02
                   ).astype(jnp.bfloat16)
    proj_w = jax.random.normal(k_w, (Hin, H), jnp.float32) * 0.1

    # Synthetic tokenized batch (input_ids + attention_mask), like **kwargs.
    input_ids = jax.random.randint(k_ids, (B, S), 0, VOCAB)
    lengths = (jnp.arange(B) % S) + 1                        # 1..S, deterministic
    attention_mask = (jnp.arange(S)[None, :] < lengths[:, None]).astype(jnp.int32)

    # Glue: embedding lookup in plain JAX; hot path in the Pallas kernel.
    hidden_states = jnp.take(embed_table, input_ids, axis=0)   # [B, S, Hin] bf16

    # normalize=True (module default).  Tolerances account for bf16 compute.
    emb = sentence_embedding(hidden_states, attention_mask, proj_w, normalize=True)
    emb = jax.block_until_ready(emb)
    ref = _reference(hidden_states, attention_mask, proj_w, normalize=True)
    assert emb.shape == (B, H)
    assert jnp.allclose(emb, ref, atol=1e-2, rtol=1e-2), (
        f"normalize=True max abs err {jnp.max(jnp.abs(emb - ref))}")

    # normalize=False path.
    emb_nn = sentence_embedding(hidden_states, attention_mask, proj_w, normalize=False)
    emb_nn = jax.block_until_ready(emb_nn)
    ref_nn = _reference(hidden_states, attention_mask, proj_w, normalize=False)
    assert jnp.allclose(emb_nn, ref_nn, atol=1e-2, rtol=1e-2), (
        f"normalize=False max abs err {jnp.max(jnp.abs(emb_nn - ref_nn))}")

    print("KERNEL_OK")
</pallas_src>

<mosaic_0001>
module attributes {stable_mosaic.version = 11 : i64} {
  func.func @_sentence_embed_kernel(%arg0: i32, %arg1: memref<8x8x128xbf16, #tpu.memory_space<vmem>>, %arg2: memref<8x1x1xi32, #tpu.memory_space<vmem>>, %arg3: memref<128x128xbf16, #tpu.memory_space<vmem>>, %arg4: memref<8x128xf32, #tpu.memory_space<vmem>>) attributes {dimension_semantics = [#tpu.dimension_semantics<parallel>], iteration_bounds = array<i64: 2>, scalar_prefetch = 0 : i64, scratch_operands = 0 : i64, tpu.core_type = #tpu.core_type<tc>, window_params = [{transform_indices = @transform_0, window_bounds = array<i64: 8, 8, 128>}, {transform_indices = @transform_1, window_bounds = array<i64: 8, 1, 1>}, {pipeline_mode = #tpu.pipeline_mode<synchronous>, transform_indices = @transform_2, window_bounds = array<i64: 128, 128>}, {transform_indices = @transform_3, window_bounds = array<i64: 8, 128>}]} {
    %c0 = arith.constant 0 : index
    %c0_0 = arith.constant 0 : index
    %c0_1 = arith.constant 0 : index
    %0 = vector.load %arg1[%c0, %c0_0, %c0_1] : memref<8x8x128xbf16, #tpu.memory_space<vmem>>, vector<8x8x128xbf16>
    %1 = arith.extf %0 : vector<8x8x128xbf16> to vector<8x8x128xf32>
    %c0_2 = arith.constant 0 : index
    %c0_3 = arith.constant 0 : index
    %c0_4 = arith.constant 0 : index
    %2 = vector.load %arg2[%c0_2, %c0_3, %c0_4] : memref<8x1x1xi32, #tpu.memory_space<vmem>>, vector<8x1x1xi32>
    %3 = tpu.iota {dimensions = array<i32: 1>} : vector<8x8x1xi32>
    %4 = vector.broadcast %2 : vector<8x1x1xi32> to vector<8x8x1xi32>
    %5 = arith.cmpi slt, %3, %4 : vector<8x8x1xi32>
    %6 = arith.extui %5 : vector<8x8x1xi1> to vector<8x8x1xi32>
    %7 = arith.sitofp %6 : vector<8x8x1xi32> to vector<8x8x1xf32>
    %8 = vector.broadcast %7 : vector<8x8x1xf32> to vector<8x8x128xf32>
    %9 = arith.mulf %1, %8 : vector<8x8x128xf32>
    %cst = arith.constant dense<0.000000e+00> : vector<8x128xf32>
    %10 = vector.multi_reduction <add>, %9, %cst [1] : vector<8x8x128xf32> to vector<8x128xf32>
    %11 = arith.truncf %10 : vector<8x128xf32> to vector<8x128xbf16>
    %c0_5 = arith.constant 0 : index
    %c0_6 = arith.constant 0 : index
    %12 = vector.load %arg3[%c0_5, %c0_6] : memref<128x128xbf16, #tpu.memory_space<vmem>>, vector<128x128xbf16>
    %cst_7 = arith.constant dense<0.000000e+00> : vector<8x128xf32>
    %13 = tpu.matmul %11, %12, %cst_7 {dimension_numbers = #tpu.dot_dimension_numbers<[1], [0], [0], [1], [0, 0, 1, 1], [], []>} : vector<8x128xbf16>, vector<128x128xbf16>, vector<8x128xf32> -> vector<8x128xf32>
    %14 = arith.mulf %13, %13 : vector<8x128xf32>
    %cst_8 = arith.constant dense<0.000000e+00> : vector<8xf32>
    %15 = vector.multi_reduction <add>, %14, %cst_8 [1] : vector<8x128xf32> to vector<8xf32>
    %16 = vector.shape_cast %15 : vector<8xf32> to vector<8x1xf32>
    %cst_9 = arith.constant 1.000000e-24 : f32
    %17 = vector.broadcast %cst_9 : f32 to vector<8x1xf32>
    %18 = arith.maximumf %16, %17 : vector<8x1xf32>
    %19 = math.rsqrt %18 : vector<8x1xf32>
    %20 = vector.broadcast %19 : vector<8x1xf32> to vector<8x128xf32>
    %21 = arith.mulf %13, %20 : vector<8x128xf32>
    %c0_10 = arith.constant 0 : index
    %c0_11 = arith.constant 0 : index
    %22 = vector.load %arg4[%c0_10, %c0_11] : memref<8x128xf32, #tpu.memory_space<vmem>>, vector<8x128xf32>
    tpu.vector_store %arg4[%c0_10, %c0_11], %21 {strides = array<i32>} : memref<8x128xf32, #tpu.memory_space<vmem>>, vector<8x128xf32>,
    return
  }
  func.func @transform_0(%arg0: i32) -> (i32, i32, i32) {
    %c0_i32 = arith.constant 0 : i32
    %c0_i32_0 = arith.constant 0 : i32
    %c0_i32_1 = arith.constant 0 : i32
    return %arg0, %c0_i32, %c0_i32_0 : i32, i32, i32
  }
  func.func @transform_1(%arg0: i32) -> (i32, i32, i32) {
    %c0_i32 = arith.constant 0 : i32
    %c0_i32_0 = arith.constant 0 : i32
    %c0_i32_1 = arith.constant 0 : i32
    return %arg0, %c0_i32, %c0_i32_0 : i32, i32, i32
  }
  func.func @transform_2(%arg0: i32) -> (i32, i32) {
    %c0_i32 = arith.constant 0 : i32
    %c0_i32_0 = arith.constant 0 : i32
    %c0_i32_1 = arith.constant 0 : i32
    return %c0_i32, %c0_i32_0 : i32, i32
  }
  func.func @transform_3(%arg0: i32) -> (i32, i32) {
    %c0_i32 = arith.constant 0 : i32
    %c0_i32_0 = arith.constant 0 : i32
    return %arg0, %c0_i32 : i32, i32
  }
}

</mosaic_0001>

<llo_original>
// kernel: tpu_custom_call.1
$region0: #{tpu_custom_call.1}
  #allocation0 [shape = 'u32[]', space=smem, size = 0x4, offset = 0x4, fixed_abs, tag = 'smem constant byte address 0x4 - core index']
  #allocation1 [shape = 'u32[144,128]{1,0:T(1,128)}', space=vmem, size = 0x12000, scoped, tag = 'internal scratch']
  %s0 = inlined_call_operand.hbm [shape: bf16[16,8,128], index: 0, kind: input, shape index: {}]
  %s1 = inlined_call_operand.vmem [shape: s32[16,1,1], index: 1, kind: input, shape index: {}]
  %s2 = inlined_call_operand.hbm [shape: bf16[128,128], index: 2, kind: input, shape index: {}]
  %s3 = inlined_call_operand.hbm [shape: f32[16,128], index: 3, kind: output, shape index: {}]
  %s4 = sld [smem:[#allocation0]]
  $region53: #{tpu_custom_call.1} parent=0
    _
  %s6 = ssub.s32 1, %s4
  %s7 = scalar_select 0, %s6, %s4
  $region1: #{tpu_custom_call.1} parent=0
    #allocation2 [shape = 'u8[32768]{0}', space=vmem, size = 0x8000, scoped, tag = 'input window, operand 0']
    #allocation3 [shape = 's32[2]{0}', space=sflag, size = 0x8, scoped, tag = 'scoped memory for tpu_custom_call.1']
    #allocation4 [shape = 's32[2]{0}', space=sflag, size = 0x8, scoped, tag = 'scoped memory for tpu_custom_call.1']
    #allocation5 [shape = 'u8[32768]{0}', space=vmem, size = 0x8000, scoped, tag = 'input window, operand 2, single buffered']
    #allocation6 [shape = 's32[1]{0}', space=sflag, size = 0x4, scoped, tag = 'scoped memory for tpu_custom_call.1']
    #allocation7 [shape = 'u8[8192]{0}', space=vmem, size = 0x2000, scoped, tag = 'output window, operand 0']
    %8 = vsyncpa [#allocation3], 0
    %s9 = scalar_lea.sflag [#allocation3], 1
    %10 = vsyncpa %s9, 0
    %11 = vsyncpa [#allocation6], 0
    %12 = vsyncpa [#allocation4], 0
    %s13 = scalar_lea.sflag [#allocation4], 1
    %14 = vsyncpa %s13, 0
    loop: start=0, step=1, limit=4
    $region2: #{tpu_custom_call.1} parent=1 // loop_pre_header
      _
    $region3: #{tpu_custom_call.1} parent=1 // loop_header
      %s16 = sphi 0, %s20
      %p17 = scmp.ge.s32.totalorder %s16, 4
      %s26 = sphi 0, %s28
      %s29 = sphi 0, %s26
      %s30 = sphi 0, %s29
      %s46 = sphi 0, %s30
      %s52 = sphi 0, %s54
      %s55 = sphi 0, %s52
      %s56 = sphi 0, %s55
      %s72 = sphi 0, %s56
      %s76 = sphi 0, %s76
      %s78 = sphi 0, %s76
      %s79 = sphi 0, %s78
      %s93 = sphi 0, %s79
      %s99 = sphi 0, %s101
      %s102 = sphi 0, %s99
      %s103 = sphi 0, %s102
      %s119 = sphi 0, %s103
    $region4: #{tpu_custom_call.1} parent=1 // loop_header_branch
      %19 = sbr.rel (%p17) target = $region8
    $region5: #{tpu_custom_call.1} parent=1 // loop_body
      %s21 = ssub.s32 %s16, 1
      %s22 = ssub.s32 %s16, 2
      %s23 = sadd.s32 %s16, 1
      %s24 = ssub.s32 %s16, %s23
      %p25 = scmp.eq.s32.totalorder %s24, 0
      %s27 = sadd.s32 %s26, 1
      %s28 = scalar_select %p25, %s26, %s27
      %p31 = pneg %p25
      %p32 = scmp.eq.s32.totalorder %s16, 1
      %p33 = por %p31, %p32
      %p34 = scmp.ne.s32.totalorder %s26, %s29
      %p35 = scmp.eq.s32.totalorder %s16, 0
      %p36 = por %p34, %p35
      %p37 = scmp.ne.s32.totalorder %s26, %s29
      %p38 = scmp.eq.s32.totalorder %s21, 1
      %p39 = por %p37, %p38
      %p40 = scmp.ne.s32.totalorder %s29, %s30
      %p41 = scmp.eq.s32.totalorder %s21, 0
      %p42 = por %p40, %p41
      %p43 = scmp.ne.s32.totalorder %s29, %s30
      %p44 = scmp.eq.s32.totalorder %s22, 1
      %p45 = por %p43, %p44
      %p47 = scmp.ne.s32.totalorder %s30, %s46
      %p48 = scmp.eq.s32.totalorder %s22, 0
      %p49 = por %p47, %p48
      %s50 = ssub.s32 %s16, %s23
      %p51 = scmp.eq.s32.totalorder %s50, 0
      %s53 = sadd.s32 %s52, 1
      %s54 = scalar_select %p51, %s52, %s53
      %p57 = pneg %p51
      %p58 = scmp.eq.s32.totalorder %s16, 1
      %p59 = por %p57, %p58
      %p60 = scmp.ne.s32.totalorder %s52, %s55
      %p61 = scmp.eq.s32.totalorder %s16, 0
      %p62 = por %p60, %p61
      %p63 = scmp.ne.s32.totalorder %s52, %s55
      %p64 = scmp.eq.s32.totalorder %s21, 1
      %p65 = por %p63, %p64
      %p66 = scmp.ne.s32.totalorder %s55, %s56
      %p67 = scmp.eq.s32.totalorder %s21, 0
      %p68 = por %p66, %p67
      %p69 = scmp.ne.s32.totalorder %s55, %s56
      %p70 = scmp.eq.s32.totalorder %s22, 1
      %p71 = por %p69, %p70
      %p73 = scmp.ne.s32.totalorder %s56, %s72
      %p74 = scmp.eq.s32.totalorder %s22, 0
      %p75 = por %p73, %p74
      %s77 = sadd.s32 %s76, 1
      %p80 = scmp.eq.s32.totalorder %s16, 1
      %p81 = scmp.ne.s32.totalorder %s76, %s78
      %p82 = scmp.eq.s32.totalorder %s16, 0
      %p83 = por %p81, %p82
      %p84 = scmp.ne.s32.totalorder %s76, %s78
      %p85 = scmp.eq.s32.totalorder %s21, 1
      %p86 = por %p84, %p85
      %p87 = scmp.ne.s32.totalorder %s78, %s79
      %p88 = scmp.eq.s32.totalorder %s21, 0
      %p89 = por %p87, %p88
      %p90 = scmp.ne.s32.totalorder %s78, %s79
      %p91 = scmp.eq.s32.totalorder %s22, 1
      %p92 = por %p90, %p91
      %p94 = scmp.ne.s32.totalorder %s79, %s93
      %p95 = scmp.eq.s32.totalorder %s22, 0
      %p96 = por %p94, %p95
      %s97 = ssub.s32 %s16, %s23
      %p98 = scmp.eq.s32.totalorder %s97, 0
      %s100 = sadd.s32 %s99, 1
      %s101 = scalar_select %p98, %s99, %s100
      %p104 = pneg %p98
      %p105 = scmp.eq.s32.totalorder %s16, 1
      %p106 = por %p104, %p105
      %p107 = scmp.ne.s32.totalorder %s99, %s102
      %p108 = scmp.eq.s32.totalorder %s16, 0
      %p109 = por %p107, %p108
      %p110 = scmp.ne.s32.totalorder %s99, %s102
      %p111 = scmp.eq.s32.totalorder %s21, 1
      %p112 = por %p110, %p111
      %p113 = scmp.ne.s32.totalorder %s102, %s103
      %p114 = scmp.eq.s32.totalorder %s21, 0
      %p115 = por %p113, %p114
      %p116 = scmp.ne.s32.totalorder %s102, %s103
      %p117 = scmp.eq.s32.totalorder %s22, 1
      %p118 = por %p116, %p117
      %p120 = scmp.ne.s32.totalorder %s103, %s119
      %p121 = scmp.eq.s32.totalorder %s22, 0
      %p122 = por %p120, %p121
      %p123 = scmp.le.s32.totalorder 1, %s16
      %p124 = scmp.lt.s32.totalorder %s16, 3
      %p125 = pnand %p123, %p124
      %p126 = pneg %p125
      // Predicated region
      $region9: #{tpu_custom_call.1} parent=5 // pred_check
        _
      $region10: #{tpu_custom_call.1} parent=5 // pred_check_branch
        %128 = sbr.rel (%p125) target = $region12
      $region11: #{tpu_custom_call.1} parent=5 // pred_region
        %s129 = ssub.s32 %s16, 1
        // Predicated region
        $region13: #{tpu_custom_call.1} parent=11 // pred_check
          %p130 = pneg %p89
        $region14: #{tpu_custom_call.1} parent=11 // pred_check_branch
          %132 = sbr.rel (%p130) target = $region16
        $region15: #{tpu_custom_call.1} parent=11 // pred_region
          %s134 = ssub.s32 1024, 1024
          %135 = vsyncadd [#allocation6], %s134
          %s136 = sshll.u32 [#allocation5], 4
          %s137 = int_to_ptr.vmem [resolvable:$true] %s136
          %142 = dma.hbm_to_vmem [thread:$0]  %s2, 1024, %s137, [#allocation6], 64, 64, 4
        $region16: #{tpu_custom_call.1} parent=11 // pred_fallthru
          _
      $region12: #{tpu_custom_call.1} parent=5 // pred_fallthru
        _
      %p143 = scmp.lt.s32.totalorder %s16, 2
      // Predicated region
      $region17: #{tpu_custom_call.1} parent=5 // pred_check
        %p144 = pneg %p143
      $region18: #{tpu_custom_call.1} parent=5 // pred_check_branch
        %146 = sbr.rel (%p144) target = $region20
      $region19: #{tpu_custom_call.1} parent=5 // pred_region
        // Predicated region
        $region21: #{tpu_custom_call.1} parent=19 // pred_check
          %p147 = pneg %p36
        $region22: #{tpu_custom_call.1} parent=19 // pred_check_branch
          %149 = sbr.rel (%p147) target = $region24
        $region23: #{tpu_custom_call.1} parent=19 // pred_region
          %s150 = sand.u32 %s26, 1
          %s151 = scalar_lea.sflag [#allocation3], %s150
          %s152 = sand.u32 %s26, 1
          %s153 = smul.addr %s152, 32
          %s154 = scalar_lea.vmem [#allocation2], %s153
          %s155 = smul.u32 8, %s16
          %s157 = ssub.s32 512, 512
          %158 = vsyncadd %s151, %s157
          %s159 = smul.addr %s155, 64
          %s160 = scalar_lea.hbm %s0, %s159
          %s161 = sshll.u32 %s154, 4
          %s162 = int_to_ptr.vmem [resolvable:$true] %s161
          %167 = dma.hbm_to_vmem [thread:$0]  %s160, 512, %s162, %s151, 64, 64, 4
        $region24: #{tpu_custom_call.1} parent=19 // pred_fallthru
          _
        // Predicated region
        $region25: #{tpu_custom_call.1} parent=19 // pred_check
          %p168 = pneg %p62
        $region26: #{tpu_custom_call.1} parent=19 // pred_check_branch
          %170 = sbr.rel (%p168) target = $region28
        $region27: #{tpu_custom_call.1} parent=19 // pred_region
          %s171 = smul.u32 8, %s16
          %p172 = scmp.lt.s32.totalorder %s171, 15
          %s173 = scalar_select %p172, %s171, 15
          %s174 = scalar_lea.vmem %s1, %s173
          %s175 = smul.u32 8, %s16
        $region28: #{tpu_custom_call.1} parent=19 // pred_fallthru
          _
      $region20: #{tpu_custom_call.1} parent=5 // pred_fallthru
        _
      %p176 = scmp.le.s32.totalorder 1, %s16
      %p177 = scmp.lt.s32.totalorder %s16, 3
      %p178 = pnand %p176, %p177
      %p179 = pneg %p178
      // Predicated region
      $region29: #{tpu_custom_call.1} parent=5 // pred_check
        _
      $region30: #{tpu_custom_call.1} parent=5 // pred_check_branch
        %181 = sbr.rel (%p178) target = $region32
      $region31: #{tpu_custom_call.1} parent=5 // pred_region
        %s182 = ssub.s32 %s16, 1
        %s183 = sand.u32 %s29, 1
        %s184 = scalar_lea.sflag [#allocation3], %s183
        %s185 = sand.u32 %s29, 1
        %s186 = smul.addr %s185, 32
        %s187 = scalar_lea.vmem [#allocation2], %s186
        // Predicated region
        $region33: #{tpu_custom_call.1} parent=31 // pred_check
          %p188 = pneg %p42
        $region34: #{tpu_custom_call.1} parent=31 // pred_check_branch
          %190 = sbr.rel (%p188) target = $region36
        $region35: #{tpu_custom_call.1} parent=31 // pred_region
          %191 = dma.done %s184, 512
        $region36: #{tpu_custom_call.1} parent=31 // pred_fallthru
          _
        // Predicated region
        $region37: #{tpu_custom_call.1} parent=31 // pred_check
          %p192 = pneg %p89
        $region38: #{tpu_custom_call.1} parent=31 // pred_check_branch
          %194 = sbr.rel (%p192) target = $region40
        $region39: #{tpu_custom_call.1} parent=31 // pred_region
          %195 = dma.done [#allocation6], 1024
        $region40: #{tpu_custom_call.1} parent=31 // pred_fallthru
          _
        %s196 = sand.u32 %s29, 1
        %s197 = scalar_lea.sflag [#allocation3], %s196
        %s198 = sand.u32 %s29, 1
        %s199 = smul.addr %s198, 32
        %s200 = scalar_lea.vmem [#allocation2], %s199
        %p201 = pneg %p42
        %p202 = pneg %p39
        %s203 = smul.u32 8, %s21
        %p204 = scmp.lt.s32.totalorder %s203, 15
        %s205 = scalar_select %p204, %s203, 15
        %s206 = scalar_lea.vmem %s1, %s205
        %p207 = pneg %p68
        %p208 = pneg %p65
        %p209 = pneg %p89
        %p210 = pneg %p86
        %p211 = pneg %p115
        %p212 = pneg %p112
        %s213 = sand.u32 %s102, 1
        %s214 = scalar_lea.sflag [#allocation4], %s213
        %s215 = sand.u32 %s102, 1
        %s216 = smul.addr %s215, 8
        %s217 = scalar_lea.vmem [#allocation7], %s216
        %s218 = smul.u32 8, %s21
        %s219 = smul.u32 8, %s21
        %p220 = scmp.lt.s32.totalorder %s219, 15
        %s221 = scalar_select %p220, %s219, 15
        %s222 = scalar_lea.vmem %s1, %s221
        %s223 = smul.u32 8, %s21
        %v225 = vld [vmem:[%s187] sm:$0xf]
        %v226 = vld [vmem:[%s187 + $0x4] sm:$0xf]
        %v227 = vld [vmem:[%s187 + $0x8] sm:$0xf]
        %v228 = vld [vmem:[%s187 + $0xc] sm:$0xf]
        %v229 = vld [vmem:[%s187 + $0x10] sm:$0xf]
        %v230 = vld [vmem:[%s187 + $0x14] sm:$0xf]
        %v231 = vld [vmem:[%s187 + $0x18] sm:$0xf]
        %v232 = vld [vmem:[%s187 + $0x1c] sm:$0xf]
        %v233 = vunpack.c.l.bf16 %v225
        %v234 = vunpack.c.l.bf16 %v226
        %v235 = vunpack.c.l.bf16 %v227
        %v236 = vunpack.c.l.bf16 %v228
        %v237 = vunpack.c.l.bf16 %v229
        %v238 = vunpack.c.l.bf16 %v230
        %v239 = vunpack.c.l.bf16 %v231
        %v240 = vunpack.c.l.bf16 %v232
        %v241 = vld [vmem:[%s222] sm:$0x1]
        %v242 = vld [vmem:[%s222 + $0x1] sm:$0x1]
        %v243 = vld [vmem:[%s222 + $0x2] sm:$0x1]
        %v244 = vld [vmem:[%s222 + $0x3] sm:$0x1]
        %v245 = vld [vmem:[%s222 + $0x4] sm:$0x1]
        %v246 = vld [vmem:[%s222 + $0x5] sm:$0x1]
        %v247 = vld [vmem:[%s222 + $0x6] sm:$0x1]
        %v248 = vld [vmem:[%s222 + $0x7] sm:$0x1]
        %v249 = vlaneseq
        %v250 = vshrl.u32 %v249, 7
        %v251 = vlaneseq
        %v252 = vshrl.u32 %v251, 7
        %v253 = vsub.s32 0, %v252
        %v254 = vrot.slane %v241, %v253
        %v255 = vlaneseq
        %v256 = vshrl.u32 %v255, 7
        %v257 = vsub.s32 0, %v256
        %v258 = vrot.slane %v242, %v257
        %v259 = vlaneseq
        %v260 = vshrl.u32 %v259, 7
        %v261 = vsub.s32 0, %v260
        %v262 = vrot.slane %v243, %v261
        %v263 = vlaneseq
        %v264 = vshrl.u32 %v263, 7
        %v265 = vsub.s32 0, %v264
        %v266 = vrot.slane %v244, %v265
        %v267 = vlaneseq
        %v268 = vshrl.u32 %v267, 7
        %v269 = vsub.s32 0, %v268
        %v270 = vrot.slane %v245, %v269
        %v271 = vlaneseq
        %v272 = vshrl.u32 %v271, 7
        %v273 = vsub.s32 0, %v272
        %v274 = vrot.slane %v246, %v273
        %v275 = vlaneseq
        %v276 = vshrl.u32 %v275, 7
        %v277 = vsub.s32 0, %v276
        %v278 = vrot.slane %v247, %v277
        %v279 = vlaneseq
        %v280 = vshrl.u32 %v279, 7
        %v281 = vsub.s32 0, %v280
        %v282 = vrot.slane %v248, %v281
        %vm283 = vcmp.lt.s32.totalorder %v250, %v254
        %vm284 = vcmp.lt.s32.totalorder %v250, %v258
        %vm285 = vcmp.lt.s32.totalorder %v250, %v262
        %vm286 = vcmp.lt.s32.totalorder %v250, %v266
        %vm287 = vcmp.lt.s32.totalorder %v250, %v270
        %vm288 = vcmp.lt.s32.totalorder %v250, %v274
        %vm289 = vcmp.lt.s32.totalorder %v250, %v278
        %vm290 = vcmp.lt.s32.totalorder %v250, %v282
        %v291 = vsel %vm283, 1, 0
        %v292 = vsel %vm284, 1, 0
        %v293 = vsel %vm285, 1, 0
        %v294 = vsel %vm286, 1, 0
        %v295 = vsel %vm287, 1, 0
        %v296 = vsel %vm288, 1, 0
        %v297 = vsel %vm289, 1, 0
        %v298 = vsel %vm290, 1, 0
        %v299 = vcvt.s32.f32 %v291
        %v300 = vcvt.s32.f32 %v292
        %v301 = vcvt.s32.f32 %v293
        %v302 = vcvt.s32.f32 %v294
        %v303 = vcvt.s32.f32 %v295
        %v304 = vcvt.s32.f32 %v296
        %v305 = vcvt.s32.f32 %v297
        %v306 = vcvt.s32.f32 %v298
        %308 = vset.pattern.permute.xlu0 0
        %309 = vperm.xlu0 %308, %v299
        %v310 = vpop.permute.xlu0 %309
        %313 = vset.pattern.permute.xlu0 0
        %314 = vperm.xlu0 %313, %v300
        %v315 = vpop.permute.xlu0 %314
        %318 = vset.pattern.permute.xlu0 0
        %319 = vperm.xlu0 %318, %v301
        %v320 = vpop.permute.xlu0 %319
        %323 = vset.pattern.permute.xlu0 0
        %324 = vperm.xlu0 %323, %v302
        %v325 = vpop.permute.xlu0 %324
        %328 = vset.pattern.permute.xlu0 0
        %329 = vperm.xlu0 %328, %v303
        %v330 = vpop.permute.xlu0 %329
        %333 = vset.pattern.permute.xlu0 0
        %334 = vperm.xlu0 %333, %v304
        %v335 = vpop.permute.xlu0 %334
        %338 = vset.pattern.permute.xlu0 0
        %339 = vperm.xlu0 %338, %v305
        %v340 = vpop.permute.xlu0 %339
        %343 = vset.pattern.permute.xlu0 0
        %344 = vperm.xlu0 %343, %v306
        %v345 = vpop.permute.xlu0 %344
        %v347 = vmul.f32 %v233, %v310
        %v348 = vmul.f32 %v234, %v315
        %v349 = vmul.f32 %v235, %v320
        %v350 = vmul.f32 %v236, %v325
        %v351 = vmul.f32 %v237, %v330
        %v352 = vmul.f32 %v238, %v335
        %v353 = vmul.f32 %v239, %v340
        %v354 = vmul.f32 %v240, %v345
        %v355 = vrot.slane %v347, 4
        %v356 = vadd.f32 %v347, %v355
        %v357 = vrot.slane %v356, 2
        %v358 = vadd.f32 %v356, %v357
        %v359 = vrot.slane %v358, 1
        %v360 = vadd.f32 %v358, %v359
        %v361 = vrot.slane %v348, 4
        %v362 = vadd.f32 %v348, %v361
        %v363 = vrot.slane %v362, 2
        %v364 = vadd.f32 %v362, %v363
        %v365 = vrot.slane %v364, 1
        %v366 = vadd.f32 %v364, %v365
        %v367 = vrot.slane %v349, 4
        %v368 = vadd.f32 %v349, %v367
        %v369 = vrot.slane %v368, 2
        %v370 = vadd.f32 %v368, %v369
        %v371 = vrot.slane %v370, 1
        %v372 = vadd.f32 %v370, %v371
        %v373 = vrot.slane %v350, 4
        %v374 = vadd.f32 %v350, %v373
        %v375 = vrot.slane %v374, 2
        %v376 = vadd.f32 %v374, %v375
        %v377 = vrot.slane %v376, 1
        %v378 = vadd.f32 %v376, %v377
        %v379 = vrot.slane %v351, 4
        %v380 = vadd.f32 %v351, %v379
        %v381 = vrot.slane %v380, 2
        %v382 = vadd.f32 %v380, %v381
        %v383 = vrot.slane %v382, 1
        %v384 = vadd.f32 %v382, %v383
        %v385 = vrot.slane %v352, 4
        %v386 = vadd.f32 %v352, %v385
        %v387 = vrot.slane %v386, 2
        %v388 = vadd.f32 %v386, %v387
        %v389 = vrot.slane %v388, 1
        %v390 = vadd.f32 %v388, %v389
        %v391 = vrot.slane %v353, 4
        %v392 = vadd.f32 %v353, %v391
        %v393 = vrot.slane %v392, 2
        %v394 = vadd.f32 %v392, %v393
        %v395 = vrot.slane %v394, 1
        %v396 = vadd.f32 %v394, %v395
        %v397 = vrot.slane %v354, 4
        %v398 = vadd.f32 %v354, %v397
        %v399 = vrot.slane %v398, 2
        %v400 = vadd.f32 %v398, %v399
        %v401 = vrot.slane %v400, 1
        %v402 = vadd.f32 %v400, %v401
        %v403 = vpack.c.bf16 %v360, %v360
        %v404 = vpack.c.bf16 %v366, %v366
        %v405 = vpack.c.bf16 %v372, %v372
        %v406 = vpack.c.bf16 %v378, %v378
        %v407 = vpack.c.bf16 %v384, %v384
        %v408 = vpack.c.bf16 %v390, %v390
        %v409 = vpack.c.bf16 %v396, %v396
        %v410 = vpack.c.bf16 %v402, %v402
        %v411 = vld [vmem:[#allocation5] sm:$0xf]
        %v412 = vld [vmem:[#allocation5 + $0x4] sm:$0xf]
        %v413 = vld [vmem:[#allocation5 + $0x8] sm:$0xf]
        %v414 = vld [vmem:[#allocation5 + $0xc] sm:$0xf]
        %v415 = vld [vmem:[#allocation5 + $0x10] sm:$0xf]
        %v416 = vld [vmem:[#allocation5 + $0x14] sm:$0xf]
        %v417 = vld [vmem:[#allocation5 + $0x18] sm:$0xf]
        %v418 = vld [vmem:[#allocation5 + $0x1c] sm:$0xf]
        %v419 = vld [vmem:[#allocation5 + $0x20] sm:$0xf]
        %v420 = vld [vmem:[#allocation5 + $0x24] sm:$0xf]
        %v421 = vld [vmem:[#allocation5 + $0x28] sm:$0xf]
        %v422 = vld [vmem:[#allocation5 + $0x2c] sm:$0xf]
        %v423 = vld [vmem:[#allocation5 + $0x30] sm:$0xf]
        %v424 = vld [vmem:[#allocation5 + $0x34] sm:$0xf]
        %v425 = vld [vmem:[#allocation5 + $0x38] sm:$0xf]
        %v426 = vld [vmem:[#allocation5 + $0x3c] sm:$0xf]
        %v435 = vunpack.c.l.b16 %v403
        %v436 = vunpack.c.l.b16 %v404
        %v437 = vunpack.c.l.b16 %v405
        %v438 = vunpack.c.l.b16 %v406
        %v439 = vunpack.c.l.b16 %v407
        %v440 = vunpack.c.l.b16 %v408
        %v441 = vunpack.c.l.b16 %v409
        %v442 = vunpack.c.l.b16 %v410
        %vm443 = vcmask 1041409
        %v444 = vsel %vm443, %v436, %v435
        %vm445 = vcmask 1042434
        %v446 = vsel %vm445, %v437, %v444
        %vm447 = vcmask 1043459
        %v448 = vsel %vm447, %v438, %v446
        %vm449 = vcmask 1044484
        %v450 = vsel %vm449, %v439, %v448
        %vm451 = vcmask 1045509
        %v452 = vsel %vm451, %v440, %v450
        %vm453 = vcmask 1046534
        %v454 = vsel %vm453, %v441, %v452
        %vm455 = vcmask 1047559
        %v456 = vsel %vm455, %v442, %v454
        %v457 = vpack.c.b16 %v456, %v456
        %v475 = vunpack.c.l.b16 %v411
        %v476 = vunpack.c.l.b16 %v412
        %v477 = vunpack.c.l.b16 %v413
        %v478 = vunpack.c.l.b16 %v414
        %v479 = vunpack.c.l.b16 %v415
        %v480 = vunpack.c.l.b16 %v416
        %v481 = vunpack.c.l.b16 %v417
        %v482 = vunpack.c.l.b16 %v418
        %v483 = vunpack.c.l.b16 %v419
        %v484 = vunpack.c.l.b16 %v420
        %v485 = vunpack.c.l.b16 %v421
        %v486 = vunpack.c.l.b16 %v422
        %v487 = vunpack.c.l.b16 %v423
        %v488 = vunpack.c.l.b16 %v424
        %v489 = vunpack.c.l.b16 %v425
        %v490 = vunpack.c.l.b16 %v426
        %v491 = vpack.c.b16 %v476, %v475
        %v492 = vpack.c.b16 %v478, %v477
        %v493 = vpack.c.b16 %v480, %v479
        %v494 = vpack.c.b16 %v482, %v481
        %v495 = vpack.c.b16 %v484, %v483
        %v496 = vpack.c.b16 %v486, %v485
        %v497 = vpack.c.b16 %v488, %v487
        %v498 = vpack.c.b16 %v490, %v489
        %507 = vmatprep.subr.bf16.mxu0 0
        %508 = vmatpush1.bf16.msra.mxu0 %v491
        %509 = vmatprep.subr.bf16.mxu0 0
        %510 = vmatpush1.bf16.msra.mxu0 %v492
        %511 = vmatprep.subr.bf16.mxu0 0
        %512 = vmatpush1.bf16.msra.mxu0 %v493
        %513 = vmatprep.subr.bf16.mxu0 0
        %514 = vmatpush1.bf16.msra.mxu0 %v494
        %515 = vmatprep.subr.bf16.mxu0 0
        %516 = vmatpush1.bf16.msra.mxu0 %v495
        %517 = vmatprep.subr.bf16.mxu0 0
        %518 = vmatpush1.bf16.msra.mxu0 %v496
        %519 = vmatprep.subr.bf16.mxu0 0
        %520 = vmatpush1.bf16.msra.mxu0 %v497
        %521 = vmatprep.subr.bf16.mxu0 0
        %522 = vmatpush1.bf16.msra.mxu0 %v498
        %523 = vmatprep.subr.bf16.mxu0 0
        %524 = vmatpush1.bf16.msra.mxu0 0
        %525 = vmatprep.subr.bf16.mxu0 0
        %526 = vmatpush1.bf16.msra.mxu0 0
        %527 = vmatprep.subr.bf16.mxu0 0
        %528 = vmatpush1.bf16.msra.mxu0 0
        %529 = vmatprep.subr.bf16.mxu0 0
        %530 = vmatpush1.bf16.msra.mxu0 0
        %531 = vmatprep.subr.bf16.mxu0 0
        %532 = vmatpush1.bf16.msra.mxu0 0
        %533 = vmatprep.subr.bf16.mxu0 0
        %534 = vmatpush1.bf16.msra.mxu0 0
        %535 = vmatprep.subr.bf16.mxu0 0
        %536 = vmatpush1.bf16.msra.mxu0 0
        %537 = vmatprep.subr.bf16.mxu0 0
        %538 = vmatpush1.bf16.msra.mxu0 0
        %539 = vmatprep.mubr.bf16.mxu0 0
        %540 = vmatmul.mubr.bf16.gmra.mrb[0].mxu0 %v457
        %v541 = vpop.f32.mrb[0].mxu0
        %v542 = vadd.f32 0.0, %v541
        %v543 = vpop.f32.mrb[0].mxu0
        %v544 = vpop.f32.mrb[0].mxu0
        %v545 = vpop.f32.mrb[0].mxu0
        %546 = vdwg.mxu0
        %v547 = vmul.f32 %v542, %v542
        %548 = vadd.xlane.f32.xlu0 %v547
        %v549 = vpop.xlane.xlu0 %548
        %v550 = vmax.f32 %v549, 1e-24
        %v551 = vrsqrt.pop %v550
        %v552 = vmul.f32 %v542, %v551
        %553 = vst [vmem:[%s217] sm:$0xff] %v552
        %s554 = sand.u32 %s102, 1
        %s555 = scalar_lea.sflag [#allocation4], %s554
        %s556 = sand.u32 %s102, 1
        %s557 = smul.addr %s556, 8
        %s558 = scalar_lea.vmem [#allocation7], %s557
        // Predicated region
        $region41: #{tpu_custom_call.1} parent=31 // pred_check
          %p559 = pneg %p112
        $region42: #{tpu_custom_call.1} parent=31 // pred_check_branch
          %561 = sbr.rel (%p559) target = $region44
        $region43: #{tpu_custom_call.1} parent=31 // pred_region
          %s563 = ssub.s32 128, 128
          %564 = vsyncadd %s555, %s563
          %s565 = smul.addr %s21, 128
          %s566 = scalar_lea.hbm %s3, %s565
          %s568 = sshll.u32 %s558, 4
          %s569 = int_to_ptr.vmem [resolvable:$true] %s568
          %571 = dma.vmem_to_hbm [thread:$0]  %s569, 128, %s566, %s555
        $region44: #{tpu_custom_call.1} parent=31 // pred_fallthru
          _
      $region32: #{tpu_custom_call.1} parent=5 // pred_fallthru
        _
      %p572 = scmp.le.s32.totalorder 2, %s16
      // Predicated region
      $region45: #{tpu_custom_call.1} parent=5 // pred_check
        %p573 = pneg %p572
      $region46: #{tpu_custom_call.1} parent=5 // pred_check_branch
        %575 = sbr.rel (%p573) target = $region48
      $region47: #{tpu_custom_call.1} parent=5 // pred_region
        %s576 = ssub.s32 %s16, 2
        // Predicated region
        $region49: #{tpu_custom_call.1} parent=47 // pred_check
          %p577 = pneg %p118
        $region50: #{tpu_custom_call.1} parent=47 // pred_check_branch
          %579 = sbr.rel (%p577) target = $region52
        $region51: #{tpu_custom_call.1} parent=47 // pred_region
          %s580 = sand.u32 %s103, 1
          %s581 = scalar_lea.sflag [#allocation4], %s580
          %s582 = sand.u32 %s103, 1
          %s583 = smul.addr %s582, 8
          %s584 = scalar_lea.vmem [#allocation7], %s583
          %585 = dma.done %s581, 128
        $region52: #{tpu_custom_call.1} parent=47 // pred_fallthru
          _
      $region48: #{tpu_custom_call.1} parent=5 // pred_fallthru
        _
    $region6: #{tpu_custom_call.1} parent=1 // loop_footer
      %s20 = sadd.s32 1, %s16
    $region7: #{tpu_custom_call.1} parent=1 // loop_footer_branch
      %15 = sbr.rel target = $region3
    $region8: #{tpu_custom_call.1} parent=1 // loop_exit
      _
    %586 = vsyncpa [#allocation3], 1
    %s587 = scalar_lea.sflag [#allocation3], 1
    %588 = vsyncpa %s587, 1
    %589 = vsyncpa [#allocation6], 1
    %590 = vsyncpa [#allocation4], 1
    %s591 = scalar_lea.sflag [#allocation4], 1
    %592 = vsyncpa %s591, 1

</llo_original>
